<compile_context>
chip_gen: v7x
topology: tpu7x:2x2x1
jax: 0.10.0
libtpu: 0.0.40
codegen_flags: <defaults>
</compile_context>

<pallas_src>
import functools
import math

import jax
import jax.numpy as jnp
from jax.experimental import pallas as pl
from jax.experimental.pallas import tpu as pltpu


def _round_up(x, m):
    return ((x + m - 1) // m) * m


def _pad2(x, rows, cols):
    r, c = x.shape
    return jnp.pad(x, ((0, rows - r), (0, cols - c)))


def _compgcn_layer_kernel(a_ref, hw_ref, side_ref, invdeg_ref, out_ref, *,
                          apply_act):
    """One (row-tile, k-tile) grid step of a CompGCN layer.

    out[i] (f32, resident across k) accumulates  sum_k adj[i,k] @ (h @ W)[k]
    (int8 adjacency upcast to bf16, bf16 MXU, f32 accumulate).
    Epilogue (k == last):
      out[i] = act( out[i] * (1/deg_i) + side[i] )
    where side = h @ W_self - C @ (rel @ W) + b was precomputed outside.
    """
    k = pl.program_id(1)

    @pl.when(k == 0)
    def _():
        out_ref[...] = jnp.zeros_like(out_ref)

    out_ref[...] += jnp.dot(a_ref[...].astype(jnp.bfloat16), hw_ref[...],
                            preferred_element_type=jnp.float32)

    @pl.when(k == pl.num_programs(1) - 1)
    def _():
        res = out_ref[...] * invdeg_ref[...] + side_ref[...]
        if apply_act:
            res = jnp.maximum(res, 0.0)          # ReLU
        out_ref[...] = res


def compgcn_layer(A8, hW, side, inv_deg, *, tm, tk, apply_act):
    """One CompGCN layer as a tiled pallas_call over the [N_p, N_p] adjacency.

    A8:      [N_p, N_p] int8, 0/1 adjacency (padded rows/cols are 0).
    hW:      [N_p, Fout_p] bf16, h @ W.
    side:    [N_p, Fout_p] f32, h @ W_self - C @ (rel @ W) + b.
    inv_deg: [N_p, 1] f32 per-row normalization.
    """
    N_p = A8.shape[0]
    Fout_p = hW.shape[1]
    grid = (N_p // tm, N_p // tk)

    kernel = functools.partial(_compgcn_layer_kernel, apply_act=apply_act)

    cost = pl.CostEstimate(
        flops=2 * N_p * N_p * Fout_p,
        transcendentals=0,
        bytes_accessed=(A8.size * A8.dtype.itemsize                 # adjacency
                        + (N_p // tm) * hW.size * hW.dtype.itemsize  # hW re-streamed per row tile
                        + side.size * side.dtype.itemsize
                        + inv_deg.size * inv_deg.dtype.itemsize
                        + N_p * Fout_p * 4),                         # output writeback
    )

    return pl.pallas_call(
        kernel,
        grid=grid,
        in_specs=[
            pl.BlockSpec((tm, tk), lambda i, k: (i, k)),        # adj (int8 0/1)
            pl.BlockSpec((tk, Fout_p), lambda i, k: (k, 0)),    # h @ W (bf16)
            pl.BlockSpec((tm, Fout_p), lambda i, k: (i, 0)),    # side term (f32)
            pl.BlockSpec((tm, 1), lambda i, k: (i, 0)),         # 1/deg (f32)
        ],
        out_specs=pl.BlockSpec((tm, Fout_p), lambda i, k: (i, 0)),
        out_shape=jax.ShapeDtypeStruct((N_p, Fout_p), jnp.float32),
        compiler_params=pltpu.CompilerParams(
            dimension_semantics=("parallel", "arbitrary"),
            vmem_limit_bytes=32 * 1024 * 1024),
        cost_estimate=cost,
    )(A8, hW, side, inv_deg)


def compgcn_forward(features, relations, adj, rel_idx, params, *,
                    block_m=1024, block_k=512):
    """CompGCN.forward: iterate layers; last layer has no activation."""
    N, _ = features.shape
    R = relations.shape[0]

    # --- layer-invariant graph prep (plain XLA glue) ---
    deg = jnp.maximum(adj.sum(axis=1, keepdims=True), 1.0)
    inv_deg = 1.0 / deg                                         # [N, 1]
    A_norm = adj * inv_deg
    # C[i, r] = sum_j A_norm[i, j] * [rel_idx[i, j] == r]
    C = jnp.stack([(A_norm * (rel_idx == r)).sum(axis=1) for r in range(R)],
                  axis=1)                                       # [N, R] f32

    # --- tiles & padding (N_p a multiple of lcm(tm, tk) => exact grid) ---
    n128 = _round_up(N, 128)
    tm = min(block_m, n128)
    tk = min(block_k, n128)
    N_p = _round_up(N, math.lcm(tm, tk))

    A8 = _pad2(adj, N_p, N_p).astype(jnp.int8)                  # 0/1, 1 B/elem
    invdeg_p = jnp.pad(inv_deg, ((0, N_p - N), (0, 0)))         # [N_p, 1]

    h = features
    rel = relations
    n_layers = len(params)
    for li, (W, W_self, W_rel, b) in enumerate(params):
        Fout = W.shape[1]
        Fout_p = _round_up(Fout, 128)

        # Reassociated small matmuls + fused side term (O(N*F) << O(N^2*F)).
        hW = jnp.dot(h, W)                                       # [N, Fout] f32
        side = jnp.dot(h, W_self) - jnp.dot(C, jnp.dot(rel, W)) + b

        hW_p = _pad2(hW, N_p, Fout_p).astype(jnp.bfloat16)
        side_p = _pad2(side, N_p, Fout_p)                        # f32

        h_p = compgcn_layer(A8, hW_p, side_p, invdeg_p,
                            tm=tm, tk=tk, apply_act=(li < n_layers - 1))
        h = h_p[:N, :Fout]
        # Relation embeddings propagated to next layer (tiny; out of kernel).
        rel = jnp.dot(rel, W_rel)

    return h


def compgcn_reference(features, relations, adj, rel_idx, params):
    """Pure-JAX f32 reference with identical semantics."""
    deg = jnp.maximum(adj.sum(axis=1, keepdims=True), 1.0)
    A_norm = adj / deg
    R = relations.shape[0]
    C = jnp.stack([(A_norm * (rel_idx == r)).sum(axis=1) for r in range(R)],
                  axis=1)
    h, rel = features, relations
    n_layers = len(params)
    for li, (W, W_self, W_rel, b) in enumerate(params):
        h_new = (jnp.dot(A_norm, jnp.dot(h, W)) + jnp.dot(h, W_self)
                 - jnp.dot(C, jnp.dot(rel, W)) + b)
        if li < n_layers - 1:
            h_new = jnp.maximum(h_new, 0.0)
        h = h_new
        rel = jnp.dot(rel, W_rel)
    return h


def init_params(key, dims):
    """Deterministic uniform(-1/sqrt(fin), 1/sqrt(fin)) init per layer."""
    params = []
    for li, (fi, fo) in enumerate(dims):
        kk = jax.random.fold_in(key, 1000 + li)
        ka, kb, kc, kd = jax.random.split(kk, 4)
        s = (1.0 / fi) ** 0.5
        W = jax.random.uniform(ka, (fi, fo), jnp.float32, -s, s)
        W_self = jax.random.uniform(kb, (fi, fo), jnp.float32, -s, s)
        W_rel = jax.random.uniform(kc, (fi, fo), jnp.float32, -s, s)
        b = jax.random.uniform(kd, (1, fo), jnp.float32, -s, s)
        params.append((W, W_self, W_rel, b))
    return params


if __name__ == "__main__":
    key = jax.random.PRNGKey(0)
    k_adj, k_rid, k_feat, k_rel = jax.random.split(key, 4)

    # Small synthetic problem (N chosen so the demo exercises a 2x2 tile grid).
    N = 256         # number of nodes
    R = 4           # number of relation types
    in_feats, n_hidden, out_feats, n_layers = 16, 32, 8, 2

    # --- build dense graph representation (plain JAX glue) ---
    adj = (jax.random.uniform(k_adj, (N, N)) < 0.1).astype(jnp.float32)
    adj = adj.at[jnp.arange(N), jnp.arange(N)].set(0.0)      # no self edges
    rel_idx = jax.random.randint(k_rid, (N, N), 0, R)        # edge -> relation

    # --- inputs ---
    features = jax.random.normal(k_feat, (N, in_feats), jnp.float32)
    relations = jax.random.normal(k_rel, (R, in_feats), jnp.float32)

    # --- parameters: [in->hid] + (n_layers-1) x [hid->hid] + [hid->out] ---
    dims = ([(in_feats, n_hidden)]
            + [(n_hidden, n_hidden)] * (n_layers - 1)
            + [(n_hidden, out_feats)])
    params = init_params(key, dims)

    # Small tiles for the demo so the (row, k) grid / resident-output
    # accumulation path runs; for large N use the default 1024/512 tiles.
    out = compgcn_forward(features, relations, adj, rel_idx, params,
                          block_m=128, block_k=128)
    out = jax.block_until_ready(out)
    assert out.shape == (N, out_feats)
    assert bool(jnp.all(jnp.isfinite(out)))

    # Accuracy vs f32 reference (hW is bf16 in the kernel path -> ~1e-2 rel.).
    ref = compgcn_reference(features, relations, adj, rel_idx, params)
    rel_err = float(jnp.max(jnp.abs(out - ref)) /
                    (jnp.max(jnp.abs(ref)) + 1e-6))
    assert rel_err < 5e-2, f"relative error too large: {rel_err}"

    print("KERNEL_OK")
</pallas_src>

<mosaic_0001>
module attributes {stable_mosaic.version = 11 : i64} {
  func.func @_compgcn_layer_kernel(%arg0: i32, %arg1: i32, %arg2: memref<128x128xi8, #tpu.memory_space<vmem>>, %arg3: memref<128x128xbf16, #tpu.memory_space<vmem>>, %arg4: memref<128x128xf32, #tpu.memory_space<vmem>>, %arg5: memref<128x1xf32, #tpu.memory_space<vmem>>, %arg6: memref<128x128xf32, #tpu.memory_space<vmem>>) attributes {dimension_semantics = [#tpu.dimension_semantics<parallel>, #tpu.dimension_semantics<arbitrary>], iteration_bounds = array<i64: 2, 2>, scalar_prefetch = 0 : i64, scratch_operands = 0 : i64, tpu.core_type = #tpu.core_type<tc>, window_params = [{transform_indices = @transform_0, window_bounds = array<i64: 128, 128>}, {transform_indices = @transform_1, window_bounds = array<i64: 128, 128>}, {transform_indices = @transform_2, window_bounds = array<i64: 128, 128>}, {transform_indices = @transform_3, window_bounds = array<i64: 128, 1>}, {transform_indices = @transform_4, window_bounds = array<i64: 128, 128>}]} {
    %c0_i32 = arith.constant 0 : i32
    %0 = arith.cmpi eq, %arg1, %c0_i32 : i32
    %1 = arith.extui %0 : i1 to i32
    %c0_i32_0 = arith.constant 0 : i32
    %2 = arith.cmpi ne, %1, %c0_i32_0 : i32
    scf.if %2 {
      %cst_9 = arith.constant 0.000000e+00 : f32
      %13 = vector.broadcast %cst_9 : f32 to vector<128x128xf32>
      %c0_10 = arith.constant 0 : index
      %c0_11 = arith.constant 0 : index
      %14 = vector.load %arg6[%c0_10, %c0_11] : memref<128x128xf32, #tpu.memory_space<vmem>>, vector<128x128xf32>
      tpu.vector_store %arg6[%c0_10, %c0_11], %13 {strides = array<i32>} : memref<128x128xf32, #tpu.memory_space<vmem>>, vector<128x128xf32>,
    } else {
    }
    %c0 = arith.constant 0 : index
    %c0_1 = arith.constant 0 : index
    %3 = vector.load %arg6[%c0, %c0_1] : memref<128x128xf32, #tpu.memory_space<vmem>>, vector<128x128xf32>
    %c0_2 = arith.constant 0 : index
    %c0_3 = arith.constant 0 : index
    %4 = vector.load %arg2[%c0_2, %c0_3] : memref<128x128xi8, #tpu.memory_space<vmem>>, vector<128x128xi8>
    %5 = arith.sitofp %4 : vector<128x128xi8> to vector<128x128xbf16>
    %c0_4 = arith.constant 0 : index
    %c0_5 = arith.constant 0 : index
    %6 = vector.load %arg3[%c0_4, %c0_5] : memref<128x128xbf16, #tpu.memory_space<vmem>>, vector<128x128xbf16>
    %cst = arith.constant dense<0.000000e+00> : vector<128x128xf32>
    %7 = tpu.matmul %5, %6, %cst {dimension_numbers = #tpu.dot_dimension_numbers<[1], [0], [0], [1], [0, 0, 1, 1], [], []>} : vector<128x128xbf16>, vector<128x128xbf16>, vector<128x128xf32> -> vector<128x128xf32>
    %8 = arith.addf %3, %7 : vector<128x128xf32>
    %c0_6 = arith.constant 0 : index
    %c0_7 = arith.constant 0 : index
    %9 = vector.load %arg6[%c0_6, %c0_7] : memref<128x128xf32, #tpu.memory_space<vmem>>, vector<128x128xf32>
    tpu.vector_store %arg6[%c0_6, %c0_7], %8 {strides = array<i32>} : memref<128x128xf32, #tpu.memory_space<vmem>>, vector<128x128xf32>,
    %c1_i32 = arith.constant 1 : i32
    %10 = arith.cmpi eq, %arg1, %c1_i32 : i32
    %11 = arith.extui %10 : i1 to i32
    %c0_i32_8 = arith.constant 0 : i32
    %12 = arith.cmpi ne, %11, %c0_i32_8 : i32
    scf.if %12 {
      %c0_9 = arith.constant 0 : index
      %c0_10 = arith.constant 0 : index
      %13 = vector.load %arg6[%c0_9, %c0_10] : memref<128x128xf32, #tpu.memory_space<vmem>>, vector<128x128xf32>
      %c0_11 = arith.constant 0 : index
      %c0_12 = arith.constant 0 : index
      %14 = vector.load %arg5[%c0_11, %c0_12] : memref<128x1xf32, #tpu.memory_space<vmem>>, vector<128x1xf32>
      %15 = vector.broadcast %14 : vector<128x1xf32> to vector<128x128xf32>
      %16 = arith.mulf %13, %15 : vector<128x128xf32>
      %c0_13 = arith.constant 0 : index
      %c0_14 = arith.constant 0 : index
      %17 = vector.load %arg4[%c0_13, %c0_14] : memref<128x128xf32, #tpu.memory_space<vmem>>, vector<128x128xf32>
      %18 = arith.addf %16, %17 : vector<128x128xf32>
      %cst_15 = arith.constant 0.000000e+00 : f32
      %19 = vector.broadcast %cst_15 : f32 to vector<128x128xf32>
      %20 = arith.maximumf %18, %19 : vector<128x128xf32>
      %c0_16 = arith.constant 0 : index
      %c0_17 = arith.constant 0 : index
      %21 = vector.load %arg6[%c0_16, %c0_17] : memref<128x128xf32, #tpu.memory_space<vmem>>, vector<128x128xf32>
      tpu.vector_store %arg6[%c0_16, %c0_17], %20 {strides = array<i32>} : memref<128x128xf32, #tpu.memory_space<vmem>>, vector<128x128xf32>,
    } else {
    }
    return
  }
  func.func @transform_0(%arg0: i32, %arg1: i32) -> (i32, i32) {
    %c0_i32 = arith.constant 0 : i32
    return %arg0, %arg1 : i32, i32
  }
  func.func @transform_1(%arg0: i32, %arg1: i32) -> (i32, i32) {
    %c0_i32 = arith.constant 0 : i32
    %c0_i32_0 = arith.constant 0 : i32
    return %arg1, %c0_i32 : i32, i32
  }
  func.func @transform_2(%arg0: i32, %arg1: i32) -> (i32, i32) {
    %c0_i32 = arith.constant 0 : i32
    %c0_i32_0 = arith.constant 0 : i32
    return %arg0, %c0_i32 : i32, i32
  }
  func.func @transform_3(%arg0: i32, %arg1: i32) -> (i32, i32) {
    %c0_i32 = arith.constant 0 : i32
    %c0_i32_0 = arith.constant 0 : i32
    return %arg0, %c0_i32 : i32, i32
  }
  func.func @transform_4(%arg0: i32, %arg1: i32) -> (i32, i32) {
    %c0_i32 = arith.constant 0 : i32
    %c0_i32_0 = arith.constant 0 : i32
    return %arg0, %c0_i32 : i32, i32
  }
}

</mosaic_0001>

<llo_original>
// kernel: tpu_custom_call.1
$region0: #{tpu_custom_call.1}
  #allocation0 [shape = 'u32[]', space=smem, size = 0x4, offset = 0x4, fixed_abs, tag = 'smem constant byte address 0x4 - core index']
  #allocation1 [shape = 'u32[144,128]{1,0:T(1,128)}', space=vmem, size = 0x12000, scoped, tag = 'internal scratch']
  %s0 = inlined_call_operand.hbm [shape: s8[256,256], index: 0, kind: input, shape index: {}]
  %s1 = inlined_call_operand.hbm [shape: bf16[256,128], index: 1, kind: input, shape index: {}]
  %s2 = inlined_call_operand.vmem [shape: f32[256,128], index: 2, kind: input, shape index: {}]
  %s3 = inlined_call_operand.vmem [shape: f32[256,1], index: 3, kind: input, shape index: {}]
  %s4 = inlined_call_operand.hbm [shape: f32[256,128], index: 4, kind: output, shape index: {}]
  %s5 = sld [smem:[#allocation0]]
  $region65: #{tpu_custom_call.1} parent=0
    _
  %s7 = ssub.s32 1, %s5
  %s8 = scalar_select 0, %s7, %s5
  $region1: #{tpu_custom_call.1} parent=0
    #allocation2 [shape = 'u8[32768]{0}', space=vmem, size = 0x8000, scoped, tag = 'input window, operand 0']
    #allocation3 [shape = 's32[2]{0}', space=sflag, size = 0x8, scoped, tag = 'scoped memory for tpu_custom_call.1']
    #allocation4 [shape = 's32[2]{0}', space=sflag, size = 0x8, scoped, tag = 'scoped memory for tpu_custom_call.1']
    #allocation5 [shape = 'u8[65536]{0}', space=vmem, size = 0x10000, scoped, tag = 'input window, operand 1']
    #allocation6 [shape = 's32[2]{0}', space=sflag, size = 0x8, scoped, tag = 'scoped memory for tpu_custom_call.1']
    #allocation7 [shape = 'u8[131072]{0}', space=vmem, size = 0x20000, scoped, tag = 'output window, operand 0']
    %9 = vsyncpa [#allocation3], 0
    %s10 = scalar_lea.sflag [#allocation3], 1
    %11 = vsyncpa %s10, 0
    %12 = vsyncpa [#allocation6], 0
    %s13 = scalar_lea.sflag [#allocation6], 1
    %14 = vsyncpa %s13, 0
    %15 = vsyncpa [#allocation4], 0
    %s16 = scalar_lea.sflag [#allocation4], 1
    %17 = vsyncpa %s16, 0
    loop: start=0, step=1, limit=6
    $region2: #{tpu_custom_call.1} parent=1 // loop_pre_header
      _
    $region3: #{tpu_custom_call.1} parent=1 // loop_header
      %s19 = sphi 0, %s23
      %p20 = scmp.ge.s32.totalorder %s19, 6
      %s26 = sphi 0, %s38
      %s27 = sphi 0, %s34
      %s28 = sphi 0, %s26
      %s29 = sphi 0, %s27
      %s30 = sphi 0, %s28
      %s31 = sphi 0, %s29
      %s43 = sphi 0, %s45
      %s46 = sphi 0, %s43
      %s47 = sphi 0, %s46
      %s63 = sphi 0, %s47
      %s69 = sphi 0, %s71
      %s72 = sphi 0, %s69
      %s73 = sphi 0, %s72
      %s89 = sphi 0, %s73
      %s95 = sphi 0, %s97
      %s98 = sphi 0, %s95
      %s99 = sphi 0, %s98
      %s115 = sphi 0, %s99
      %s121 = sphi 0, %s123
      %s124 = sphi 0, %s121
      %s125 = sphi 0, %s124
      %s141 = sphi 0, %s125
      %s147 = sphi 0, %s149
      %s150 = sphi 0, %s147
      %s151 = sphi 0, %s150
      %s167 = sphi 0, %s151
    $region4: #{tpu_custom_call.1} parent=1 // loop_header_branch
      %22 = sbr.rel (%p20) target = $region8
    $region5: #{tpu_custom_call.1} parent=1 // loop_body
      %s24 = ssub.s32 %s19, 1
      %s25 = ssub.s32 %s19, 2
      %s32 = sadd.s32 1, %s27
      %p33 = scmp.ge.s32.totalorder %s32, 2
      %s34 = scalar_select %p33, 0, %s32
      %s35 = sadd.s32 1, %s26
      %s36 = scalar_select %p33, %s35, %s26
      %p37 = scmp.ge.s32.totalorder %s36, 2
      %s38 = scalar_select %p37, 0, %s36
      %s39 = ssub.s32 %s26, %s38
      %s40 = ssub.s32 %s27, %s34
      %s41 = sor.u32 %s39, %s40
      %p42 = scmp.eq.s32.totalorder %s41, 0
      %s44 = sadd.s32 %s43, 1
      %s45 = scalar_select %p42, %s43, %s44
      %p48 = pneg %p42
      %p49 = scmp.eq.s32.totalorder %s19, 3
      %p50 = por %p48, %p49
      %p51 = scmp.ne.s32.totalorder %s43, %s46
      %p52 = scmp.eq.s32.totalorder %s19, 0
      %p53 = por %p51, %p52
      %p54 = scmp.ne.s32.totalorder %s43, %s46
      %p55 = scmp.eq.s32.totalorder %s24, 3
      %p56 = por %p54, %p55
      %p57 = scmp.ne.s32.totalorder %s46, %s47
      %p58 = scmp.eq.s32.totalorder %s24, 0
      %p59 = por %p57, %p58
      %p60 = scmp.ne.s32.totalorder %s46, %s47
      %p61 = scmp.eq.s32.totalorder %s25, 3
      %p62 = por %p60, %p61
      %p64 = scmp.ne.s32.totalorder %s47, %s63
      %p65 = scmp.eq.s32.totalorder %s25, 0
      %p66 = por %p64, %p65
      %s67 = ssub.s32 %s27, %s34
      %p68 = scmp.eq.s32.totalorder %s67, 0
      %s70 = sadd.s32 %s69, 1
      %s71 = scalar_select %p68, %s69, %s70
      %p74 = pneg %p68
      %p75 = scmp.eq.s32.totalorder %s19, 3
      %p76 = por %p74, %p75
      %p77 = scmp.ne.s32.totalorder %s69, %s72
      %p78 = scmp.eq.s32.totalorder %s19, 0
      %p79 = por %p77, %p78
      %p80 = scmp.ne.s32.totalorder %s69, %s72
      %p81 = scmp.eq.s32.totalorder %s24, 3
      %p82 = por %p80, %p81
      %p83 = scmp.ne.s32.totalorder %s72, %s73
      %p84 = scmp.eq.s32.totalorder %s24, 0
      %p85 = por %p83, %p84
      %p86 = scmp.ne.s32.totalorder %s72, %s73
      %p87 = scmp.eq.s32.totalorder %s25, 3
      %p88 = por %p86, %p87
      %p90 = scmp.ne.s32.totalorder %s73, %s89
      %p91 = scmp.eq.s32.totalorder %s25, 0
      %p92 = por %p90, %p91
      %s93 = ssub.s32 %s26, %s38
      %p94 = scmp.eq.s32.totalorder %s93, 0
      %s96 = sadd.s32 %s95, 1
      %s97 = scalar_select %p94, %s95, %s96
      %p100 = pneg %p94
      %p101 = scmp.eq.s32.totalorder %s19, 3
      %p102 = por %p100, %p101
      %p103 = scmp.ne.s32.totalorder %s95, %s98
      %p104 = scmp.eq.s32.totalorder %s19, 0
      %p105 = por %p103, %p104
      %p106 = scmp.ne.s32.totalorder %s95, %s98
      %p107 = scmp.eq.s32.totalorder %s24, 3
      %p108 = por %p106, %p107
      %p109 = scmp.ne.s32.totalorder %s98, %s99
      %p110 = scmp.eq.s32.totalorder %s24, 0
      %p111 = por %p109, %p110
      %p112 = scmp.ne.s32.totalorder %s98, %s99
      %p113 = scmp.eq.s32.totalorder %s25, 3
      %p114 = por %p112, %p113
      %p116 = scmp.ne.s32.totalorder %s99, %s115
      %p117 = scmp.eq.s32.totalorder %s25, 0
      %p118 = por %p116, %p117
      %s119 = ssub.s32 %s26, %s38
      %p120 = scmp.eq.s32.totalorder %s119, 0
      %s122 = sadd.s32 %s121, 1
      %s123 = scalar_select %p120, %s121, %s122
      %p126 = pneg %p120
      %p127 = scmp.eq.s32.totalorder %s19, 3
      %p128 = por %p126, %p127
      %p129 = scmp.ne.s32.totalorder %s121, %s124
      %p130 = scmp.eq.s32.totalorder %s19, 0
      %p131 = por %p129, %p130
      %p132 = scmp.ne.s32.totalorder %s121, %s124
      %p133 = scmp.eq.s32.totalorder %s24, 3
      %p134 = por %p132, %p133
      %p135 = scmp.ne.s32.totalorder %s124, %s125
      %p136 = scmp.eq.s32.totalorder %s24, 0
      %p137 = por %p135, %p136
      %p138 = scmp.ne.s32.totalorder %s124, %s125
      %p139 = scmp.eq.s32.totalorder %s25, 3
      %p140 = por %p138, %p139
      %p142 = scmp.ne.s32.totalorder %s125, %s141
      %p143 = scmp.eq.s32.totalorder %s25, 0
      %p144 = por %p142, %p143
      %s145 = ssub.s32 %s26, %s38
      %p146 = scmp.eq.s32.totalorder %s145, 0
      %s148 = sadd.s32 %s147, 1
      %s149 = scalar_select %p146, %s147, %s148
      %p152 = pneg %p146
      %p153 = scmp.eq.s32.totalorder %s19, 3
      %p154 = por %p152, %p153
      %p155 = scmp.ne.s32.totalorder %s147, %s150
      %p156 = scmp.eq.s32.totalorder %s19, 0
      %p157 = por %p155, %p156
      %p158 = scmp.ne.s32.totalorder %s147, %s150
      %p159 = scmp.eq.s32.totalorder %s24, 3
      %p160 = por %p158, %p159
      %p161 = scmp.ne.s32.totalorder %s150, %s151
      %p162 = scmp.eq.s32.totalorder %s24, 0
      %p163 = por %p161, %p162
      %p164 = scmp.ne.s32.totalorder %s150, %s151
      %p165 = scmp.eq.s32.totalorder %s25, 3
      %p166 = por %p164, %p165
      %p168 = scmp.ne.s32.totalorder %s151, %s167
      %p169 = scmp.eq.s32.totalorder %s25, 0
      %p170 = por %p168, %p169
      %p171 = scmp.le.s32.totalorder 1, %s19
      %p172 = scmp.lt.s32.totalorder %s19, 5
      %p173 = pnand %p171, %p172
      %p174 = pneg %p173
      // Predicated region
      $region9: #{tpu_custom_call.1} parent=5 // pred_check
        _
      $region10: #{tpu_custom_call.1} parent=5 // pred_check_branch
        %176 = sbr.rel (%p173) target = $region12
      $region11: #{tpu_custom_call.1} parent=5 // pred_region
        %s177 = ssub.s32 %s19, 1
      $region12: #{tpu_custom_call.1} parent=5 // pred_fallthru
        _
      %p178 = scmp.lt.s32.totalorder %s19, 4
      // Predicated region
      $region13: #{tpu_custom_call.1} parent=5 // pred_check
        %p179 = pneg %p178
      $region14: #{tpu_custom_call.1} parent=5 // pred_check_branch
        %181 = sbr.rel (%p179) target = $region16
      $region15: #{tpu_custom_call.1} parent=5 // pred_region
        // Predicated region
        $region17: #{tpu_custom_call.1} parent=15 // pred_check
          %p182 = pneg %p53
        $region18: #{tpu_custom_call.1} parent=15 // pred_check_branch
          %184 = sbr.rel (%p182) target = $region20
        $region19: #{tpu_custom_call.1} parent=15 // pred_region
          %s185 = sand.u32 %s43, 1
          %s186 = scalar_lea.sflag [#allocation3], %s185
          %s187 = sand.u32 %s43, 1
          %s188 = smul.addr %s187, 32
          %s189 = scalar_lea.vmem [#allocation2], %s188
          %s190 = smul.u32 4, %s26
          %s192 = ssub.s32 512, 512
          %193 = vsyncadd %s186, %s192
          %s194 = smul.addr %s190, 2
          %s195 = sadd.s32 %s27, %s194
          %s196 = smul.addr %s195, 128
          %s197 = scalar_lea.hbm %s0, %s196
          %s198 = sshll.u32 %s189, 4
          %s199 = int_to_ptr.vmem [resolvable:$true] %s198
          %204 = dma.hbm_to_vmem [thread:$0]  %s197, 512, %s199, %s186, 256, 128, 8
        $region20: #{tpu_custom_call.1} parent=15 // pred_fallthru
          _
        // Predicated region
        $region21: #{tpu_custom_call.1} parent=15 // pred_check
          %p205 = pneg %p79
        $region22: #{tpu_custom_call.1} parent=15 // pred_check_branch
          %207 = sbr.rel (%p205) target = $region24
        $region23: #{tpu_custom_call.1} parent=15 // pred_region
          %s208 = sand.u32 %s69, 1
          %s209 = scalar_lea.sflag [#allocation6], %s208
          %s210 = sand.u32 %s69, 1
          %s211 = smul.addr %s210, 64
          %s212 = scalar_lea.vmem [#allocation5], %s211
          %s213 = smul.u32 16, %s27
          %s215 = ssub.s32 1024, 1024
          %216 = vsyncadd %s209, %s215
          %s217 = smul.addr %s213, 64
          %s218 = scalar_lea.hbm %s1, %s217
          %s219 = sshll.u32 %s212, 4
          %s220 = int_to_ptr.vmem [resolvable:$true] %s219
          %225 = dma.hbm_to_vmem [thread:$0]  %s218, 1024, %s220, %s209, 64, 64, 4
        $region24: #{tpu_custom_call.1} parent=15 // pred_fallthru
          _
        // Predicated region
        $region25: #{tpu_custom_call.1} parent=15 // pred_check
          %p226 = pneg %p105
        $region26: #{tpu_custom_call.1} parent=15 // pred_check_branch
          %228 = sbr.rel (%p226) target = $region28
        $region27: #{tpu_custom_call.1} parent=15 // pred_region
          %s229 = smul.u32 16, %s26
          %p230 = scmp.lt.s32.totalorder %s229, 31
          %s231 = scalar_select %p230, %s229, 31
          %s232 = smul.addr %s231, 8
          %s233 = scalar_lea.vmem %s2, %s232
          %s234 = smul.u32 16, %s26
        $region28: #{tpu_custom_call.1} parent=15 // pred_fallthru
          _
        // Predicated region
        $region29: #{tpu_custom_call.1} parent=15 // pred_check
          %p235 = pneg %p131
        $region30: #{tpu_custom_call.1} parent=15 // pred_check_branch
          %237 = sbr.rel (%p235) target = $region32
        $region31: #{tpu_custom_call.1} parent=15 // pred_region
          %s238 = smul.u32 16, %s26
          %p239 = scmp.lt.s32.totalorder %s238, 31
          %s240 = scalar_select %p239, %s238, 31
          %s241 = smul.addr %s240, 8
          %s242 = scalar_lea.vmem %s3, %s241
          %s243 = smul.u32 16, %s26
        $region32: #{tpu_custom_call.1} parent=15 // pred_fallthru
          _
      $region16: #{tpu_custom_call.1} parent=5 // pred_fallthru
        _
      %p244 = scmp.le.s32.totalorder 1, %s19
      %p245 = scmp.lt.s32.totalorder %s19, 5
      %p246 = pnand %p244, %p245
      %p247 = pneg %p246
      // Predicated region
      $region33: #{tpu_custom_call.1} parent=5 // pred_check
        _
      $region34: #{tpu_custom_call.1} parent=5 // pred_check_branch
        %249 = sbr.rel (%p246) target = $region36
      $region35: #{tpu_custom_call.1} parent=5 // pred_region
        %s250 = ssub.s32 %s19, 1
        %s251 = sand.u32 %s46, 1
        %s252 = scalar_lea.sflag [#allocation3], %s251
        %s253 = sand.u32 %s46, 1
        %s254 = smul.addr %s253, 32
        %s255 = scalar_lea.vmem [#allocation2], %s254
        // Predicated region
        $region37: #{tpu_custom_call.1} parent=35 // pred_check
          %p256 = pneg %p59
        $region38: #{tpu_custom_call.1} parent=35 // pred_check_branch
          %258 = sbr.rel (%p256) target = $region40
        $region39: #{tpu_custom_call.1} parent=35 // pred_region
          %259 = dma.done %s252, 512
        $region40: #{tpu_custom_call.1} parent=35 // pred_fallthru
          _
        %s260 = sand.u32 %s72, 1
        %s261 = scalar_lea.sflag [#allocation6], %s260
        %s262 = sand.u32 %s72, 1
        %s263 = smul.addr %s262, 64
        %s264 = scalar_lea.vmem [#allocation5], %s263
        // Predicated region
        $region41: #{tpu_custom_call.1} parent=35 // pred_check
          %p265 = pneg %p85
        $region42: #{tpu_custom_call.1} parent=35 // pred_check_branch
          %267 = sbr.rel (%p265) target = $region44
        $region43: #{tpu_custom_call.1} parent=35 // pred_region
          %268 = dma.done %s261, 1024
        $region44: #{tpu_custom_call.1} parent=35 // pred_fallthru
          _
        %s269 = sand.u32 %s46, 1
        %s270 = scalar_lea.sflag [#allocation3], %s269
        %s271 = sand.u32 %s46, 1
        %s272 = smul.addr %s271, 32
        %s273 = scalar_lea.vmem [#allocation2], %s272
        %p274 = pneg %p59
        %p275 = pneg %p56
        %s276 = sand.u32 %s72, 1
        %s277 = scalar_lea.sflag [#allocation6], %s276
        %s278 = sand.u32 %s72, 1
        %s279 = smul.addr %s278, 64
        %s280 = scalar_lea.vmem [#allocation5], %s279
        %p281 = pneg %p85
        %p282 = pneg %p82
        %s283 = smul.u32 16, %s28
        %p284 = scmp.lt.s32.totalorder %s283, 31
        %s285 = scalar_select %p284, %s283, 31
        %s286 = smul.addr %s285, 8
        %s287 = scalar_lea.vmem %s2, %s286
        %p288 = pneg %p111
        %p289 = pneg %p108
        %s290 = smul.u32 16, %s28
        %p291 = scmp.lt.s32.totalorder %s290, 31
        %s292 = scalar_select %p291, %s290, 31
        %s293 = smul.addr %s292, 8
        %s294 = scalar_lea.vmem %s3, %s293
        %p295 = pneg %p137
        %p296 = pneg %p134
        %p297 = pneg %p163
        %p298 = pneg %p160
        %s299 = sand.u32 %s150, 1
        %s300 = scalar_lea.sflag [#allocation4], %s299
        %s301 = sand.u32 %s150, 1
        %s302 = smul.addr %s301, 128
        %s303 = scalar_lea.vmem [#allocation7], %s302
        %s304 = smul.u32 4, %s28
        %s305 = smul.u32 16, %s29
        %s306 = smul.u32 16, %s28
        %p307 = scmp.lt.s32.totalorder %s306, 31
        %s308 = scalar_select %p307, %s306, 31
        %s309 = smul.addr %s308, 8
        %s310 = scalar_lea.vmem %s2, %s309
        %s311 = smul.u32 16, %s28
        %s312 = smul.u32 16, %s28
        %p313 = scmp.lt.s32.totalorder %s312, 31
        %s314 = scalar_select %p313, %s312, 31
        %s315 = smul.addr %s314, 8
        %s316 = scalar_lea.vmem %s3, %s315
        %s317 = smul.u32 16, %s28
        %s318 = smul.u32 16, %s28
        %p320 = scmp.eq.s32.totalorder %s29, 0
        // Predicated region
        $region45: #{tpu_custom_call.1} parent=35 // pred_check
          %p321 = pneg %p320
        $region46: #{tpu_custom_call.1} parent=35 // pred_check_branch
          %323 = sbr.rel (%p321) target = $region48
        $region47: #{tpu_custom_call.1} parent=35 // pred_region
          %324 = vst [vmem:[%s303] sm:$0xff] 0.0
          %325 = vst [vmem:[%s303 + $0x8] sm:$0xff] 0.0
          %326 = vst [vmem:[%s303 + $0x10] sm:$0xff] 0.0
          %327 = vst [vmem:[%s303 + $0x18] sm:$0xff] 0.0
          %328 = vst [vmem:[%s303 + $0x20] sm:$0xff] 0.0
          %329 = vst [vmem:[%s303 + $0x28] sm:$0xff] 0.0
          %330 = vst [vmem:[%s303 + $0x30] sm:$0xff] 0.0
          %331 = vst [vmem:[%s303 + $0x38] sm:$0xff] 0.0
          %332 = vst [vmem:[%s303 + $0x40] sm:$0xff] 0.0
          %333 = vst [vmem:[%s303 + $0x48] sm:$0xff] 0.0
          %334 = vst [vmem:[%s303 + $0x50] sm:$0xff] 0.0
          %335 = vst [vmem:[%s303 + $0x58] sm:$0xff] 0.0
          %336 = vst [vmem:[%s303 + $0x60] sm:$0xff] 0.0
          %337 = vst [vmem:[%s303 + $0x68] sm:$0xff] 0.0
          %338 = vst [vmem:[%s303 + $0x70] sm:$0xff] 0.0
          %339 = vst [vmem:[%s303 + $0x78] sm:$0xff] 0.0
        $region48: #{tpu_custom_call.1} parent=35 // pred_fallthru
          _
        %v340 = vld [vmem:[%s303] sm:$0xff]
        %v341 = vld [vmem:[%s303 + $0x8] sm:$0xff]
        %v342 = vld [vmem:[%s303 + $0x10] sm:$0xff]
        %v343 = vld [vmem:[%s303 + $0x18] sm:$0xff]
        %v344 = vld [vmem:[%s303 + $0x20] sm:$0xff]
        %v345 = vld [vmem:[%s303 + $0x28] sm:$0xff]
        %v346 = vld [vmem:[%s303 + $0x30] sm:$0xff]
        %v347 = vld [vmem:[%s303 + $0x38] sm:$0xff]
        %v348 = vld [vmem:[%s303 + $0x40] sm:$0xff]
        %v349 = vld [vmem:[%s303 + $0x48] sm:$0xff]
        %v350 = vld [vmem:[%s303 + $0x50] sm:$0xff]
        %v351 = vld [vmem:[%s303 + $0x58] sm:$0xff]
        %v352 = vld [vmem:[%s303 + $0x60] sm:$0xff]
        %v353 = vld [vmem:[%s303 + $0x68] sm:$0xff]
        %v354 = vld [vmem:[%s303 + $0x70] sm:$0xff]
        %v355 = vld [vmem:[%s303 + $0x78] sm:$0xff]
        %v356 = vld [vmem:[%s255] sm:$0xff]
        %v357 = vld [vmem:[%s255 + $0x8] sm:$0xff]
        %v358 = vld [vmem:[%s255 + $0x10] sm:$0xff]
        %v359 = vld [vmem:[%s255 + $0x18] sm:$0xff]
        %v360 = vunpack.c.l.s8.bf16 %v356
        %v361 = vunpack.c.h.s8.bf16 %v356
        %v362 = vunpack.c.l.s8.bf16 %v357
        %v363 = vunpack.c.h.s8.bf16 %v357
        %v364 = vunpack.c.l.s8.bf16 %v358
        %v365 = vunpack.c.h.s8.bf16 %v358
        %v366 = vunpack.c.l.s8.bf16 %v359
        %v367 = vunpack.c.h.s8.bf16 %v359
        %v368 = vld [vmem:[%s264] sm:$0xf]
        %v369 = vld [vmem:[%s264 + $0x4] sm:$0xf]
        %v370 = vld [vmem:[%s264 + $0x8] sm:$0xf]
        %v371 = vld [vmem:[%s264 + $0xc] sm:$0xf]
        %v372 = vld [vmem:[%s264 + $0x10] sm:$0xf]
        %v373 = vld [vmem:[%s264 + $0x14] sm:$0xf]
        %v374 = vld [vmem:[%s264 + $0x18] sm:$0xf]
        %v375 = vld [vmem:[%s264 + $0x1c] sm:$0xf]
        %v376 = vld [vmem:[%s264 + $0x20] sm:$0xf]
        %v377 = vld [vmem:[%s264 + $0x24] sm:$0xf]
        %v378 = vld [vmem:[%s264 + $0x28] sm:$0xf]
        %v379 = vld [vmem:[%s264 + $0x2c] sm:$0xf]
        %v380 = vld [vmem:[%s264 + $0x30] sm:$0xf]
        %v381 = vld [vmem:[%s264 + $0x34] sm:$0xf]
        %v382 = vld [vmem:[%s264 + $0x38] sm:$0xf]
        %v383 = vld [vmem:[%s264 + $0x3c] sm:$0xf]
        %v400 = vunpack.c.l.b16 %v368
        %v401 = vunpack.c.l.b16 %v369
        %v402 = vunpack.c.l.b16 %v370
        %v403 = vunpack.c.l.b16 %v371
        %v404 = vunpack.c.l.b16 %v372
        %v405 = vunpack.c.l.b16 %v373
        %v406 = vunpack.c.l.b16 %v374
        %v407 = vunpack.c.l.b16 %v375
        %v408 = vunpack.c.l.b16 %v376
        %v409 = vunpack.c.l.b16 %v377
        %v410 = vunpack.c.l.b16 %v378
        %v411 = vunpack.c.l.b16 %v379
        %v412 = vunpack.c.l.b16 %v380
        %v413 = vunpack.c.l.b16 %v381
        %v414 = vunpack.c.l.b16 %v382
        %v415 = vunpack.c.l.b16 %v383
        %v416 = vpack.c.b16 %v401, %v400
        %v417 = vpack.c.b16 %v403, %v402
        %v418 = vpack.c.b16 %v405, %v404
        %v419 = vpack.c.b16 %v407, %v406
        %v420 = vpack.c.b16 %v409, %v408
        %v421 = vpack.c.b16 %v411, %v410
        %v422 = vpack.c.b16 %v413, %v412
        %v423 = vpack.c.b16 %v415, %v414
        %432 = vmatprep.subr.bf16.mxu0 0
        %433 = vmatpush1.bf16.msra.mxu0 %v416
        %434 = vmatprep.subr.bf16.mxu0 0
        %435 = vmatpush1.bf16.msra.mxu0 %v417
        %436 = vmatprep.subr.bf16.mxu0 0
        %437 = vmatpush1.bf16.msra.mxu0 %v418
        %438 = vmatprep.subr.bf16.mxu0 0
        %439 = vmatpush1.bf16.msra.mxu0 %v419
        %440 = vmatprep.subr.bf16.mxu0 0
        %441 = vmatpush1.bf16.msra.mxu0 %v420
        %442 = vmatprep.subr.bf16.mxu0 0
        %443 = vmatpush1.bf16.msra.mxu0 %v421
        %444 = vmatprep.subr.bf16.mxu0 0
        %445 = vmatpush1.bf16.msra.mxu0 %v422
        %446 = vmatprep.subr.bf16.mxu0 0
        %447 = vmatpush1.bf16.msra.mxu0 %v423
        %448 = vmatprep.subr.bf16.mxu0 0
        %449 = vmatpush1.bf16.msra.mxu0 0
        %450 = vmatprep.subr.bf16.mxu0 0
        %451 = vmatpush1.bf16.msra.mxu0 0
        %452 = vmatprep.subr.bf16.mxu0 0
        %453 = vmatpush1.bf16.msra.mxu0 0
        %454 = vmatprep.subr.bf16.mxu0 0
        %455 = vmatpush1.bf16.msra.mxu0 0
        %456 = vmatprep.subr.bf16.mxu0 0
        %457 = vmatpush1.bf16.msra.mxu0 0
        %458 = vmatprep.subr.bf16.mxu0 0
        %459 = vmatpush1.bf16.msra.mxu0 0
        %460 = vmatprep.subr.bf16.mxu0 0
        %461 = vmatpush1.bf16.msra.mxu0 0
        %462 = vmatprep.subr.bf16.mxu0 0
        %463 = vmatpush1.bf16.msra.mxu0 0
        %464 = vmatprep.mubr.bf16.mxu0 0
        %465 = vmatmul.mubr.bf16.gmra.mrb[0].mxu0 %v360
        %v466 = vpop.f32.mrb[0].mxu0
        %v467 = vadd.f32 0.0, %v466
        %v468 = vpop.f32.mrb[0].mxu0
        %v469 = vpop.f32.mrb[0].mxu0
        %v470 = vadd.f32 0.0, %v469
        %v471 = vpop.f32.mrb[0].mxu0
        %472 = vmatprep.mubr.bf16.mxu0 0
        %473 = vmatmul.mubr.bf16.gmra.mrb[0].mxu0 %v361
        %v474 = vpop.f32.mrb[0].mxu0
        %v475 = vadd.f32 0.0, %v474
        %v476 = vpop.f32.mrb[0].mxu0
        %v477 = vpop.f32.mrb[0].mxu0
        %v478 = vadd.f32 0.0, %v477
        %v479 = vpop.f32.mrb[0].mxu0
        %480 = vmatprep.mubr.bf16.mxu0 0
        %481 = vmatmul.mubr.bf16.gmra.mrb[0].mxu0 %v362
        %v482 = vpop.f32.mrb[0].mxu0
        %v483 = vadd.f32 0.0, %v482
        %v484 = vpop.f32.mrb[0].mxu0
        %v485 = vpop.f32.mrb[0].mxu0
        %v486 = vadd.f32 0.0, %v485
        %v487 = vpop.f32.mrb[0].mxu0
        %488 = vmatprep.mubr.bf16.mxu0 0
        %489 = vmatmul.mubr.bf16.gmra.mrb[0].mxu0 %v363
        %v490 = vpop.f32.mrb[0].mxu0
        %v491 = vadd.f32 0.0, %v490
        %v492 = vpop.f32.mrb[0].mxu0
        %v493 = vpop.f32.mrb[0].mxu0
        %v494 = vadd.f32 0.0, %v493
        %v495 = vpop.f32.mrb[0].mxu0
        %496 = vmatprep.mubr.bf16.mxu0 0
        %497 = vmatmul.mubr.bf16.gmra.mrb[0].mxu0 %v364
        %v498 = vpop.f32.mrb[0].mxu0
        %v499 = vadd.f32 0.0, %v498
        %v500 = vpop.f32.mrb[0].mxu0
        %v501 = vpop.f32.mrb[0].mxu0
        %v502 = vadd.f32 0.0, %v501
        %v503 = vpop.f32.mrb[0].mxu0
        %504 = vmatprep.mubr.bf16.mxu0 0
        %505 = vmatmul.mubr.bf16.gmra.mrb[0].mxu0 %v365
        %v506 = vpop.f32.mrb[0].mxu0
        %v507 = vadd.f32 0.0, %v506
        %v508 = vpop.f32.mrb[0].mxu0
        %v509 = vpop.f32.mrb[0].mxu0
        %v510 = vadd.f32 0.0, %v509
        %v511 = vpop.f32.mrb[0].mxu0
        %512 = vmatprep.mubr.bf16.mxu0 0
        %513 = vmatmul.mubr.bf16.gmra.mrb[0].mxu0 %v366
        %v514 = vpop.f32.mrb[0].mxu0
        %v515 = vadd.f32 0.0, %v514
        %v516 = vpop.f32.mrb[0].mxu0
        %v517 = vpop.f32.mrb[0].mxu0
        %v518 = vadd.f32 0.0, %v517
        %v519 = vpop.f32.mrb[0].mxu0
        %520 = vmatprep.mubr.bf16.mxu0 0
        %521 = vmatmul.mubr.bf16.gmra.mrb[0].mxu0 %v367
        %v522 = vpop.f32.mrb[0].mxu0
        %v523 = vadd.f32 0.0, %v522
        %v524 = vpop.f32.mrb[0].mxu0
        %v525 = vpop.f32.mrb[0].mxu0
        %v526 = vadd.f32 0.0, %v525
        %v527 = vpop.f32.mrb[0].mxu0
        %528 = vdwg.mxu0
        %v529 = vadd.f32 %v340, %v467
        %v530 = vadd.f32 %v341, %v470
        %v531 = vadd.f32 %v342, %v475
        %v532 = vadd.f32 %v343, %v478
        %v533 = vadd.f32 %v344, %v483
        %v534 = vadd.f32 %v345, %v486
        %v535 = vadd.f32 %v346, %v491
        %v536 = vadd.f32 %v347, %v494
        %v537 = vadd.f32 %v348, %v499
        %v538 = vadd.f32 %v349, %v502
        %v539 = vadd.f32 %v350, %v507
        %v540 = vadd.f32 %v351, %v510
        %v541 = vadd.f32 %v352, %v515
        %v542 = vadd.f32 %v353, %v518
        %v543 = vadd.f32 %v354, %v523
        %v544 = vadd.f32 %v355, %v526
        %545 = vst [vmem:[%s303] sm:$0xff] %v529
        %546 = vst [vmem:[%s303 + $0x8] sm:$0xff] %v530
        %547 = vst [vmem:[%s303 + $0x10] sm:$0xff] %v531
        %548 = vst [vmem:[%s303 + $0x18] sm:$0xff] %v532
        %549 = vst [vmem:[%s303 + $0x20] sm:$0xff] %v533
        %550 = vst [vmem:[%s303 + $0x28] sm:$0xff] %v534
        %551 = vst [vmem:[%s303 + $0x30] sm:$0xff] %v535
        %552 = vst [vmem:[%s303 + $0x38] sm:$0xff] %v536
        %553 = vst [vmem:[%s303 + $0x40] sm:$0xff] %v537
        %554 = vst [vmem:[%s303 + $0x48] sm:$0xff] %v538
        %555 = vst [vmem:[%s303 + $0x50] sm:$0xff] %v539
        %556 = vst [vmem:[%s303 + $0x58] sm:$0xff] %v540
        %557 = vst [vmem:[%s303 + $0x60] sm:$0xff] %v541
        %558 = vst [vmem:[%s303 + $0x68] sm:$0xff] %v542
        %559 = vst [vmem:[%s303 + $0x70] sm:$0xff] %v543
        %560 = vst [vmem:[%s303 + $0x78] sm:$0xff] %v544
        %p561 = scmp.eq.s32.totalorder %s29, 1
        // Predicated region
        $region49: #{tpu_custom_call.1} parent=35 // pred_check
          %p562 = pneg %p561
        $region50: #{tpu_custom_call.1} parent=35 // pred_check_branch
          %564 = sbr.rel (%p562) target = $region52
        $region51: #{tpu_custom_call.1} parent=35 // pred_region
          %v565 = vld [vmem:[%s303] sm:$0xff]
          %v566 = vld [vmem:[%s303 + $0x8] sm:$0xff]
          %v567 = vld [vmem:[%s303 + $0x10] sm:$0xff]
          %v568 = vld [vmem:[%s303 + $0x18] sm:$0xff]
          %v569 = vld [vmem:[%s303 + $0x20] sm:$0xff]
          %v570 = vld [vmem:[%s303 + $0x28] sm:$0xff]
          %v571 = vld [vmem:[%s303 + $0x30] sm:$0xff]
          %v572 = vld [vmem:[%s303 + $0x38] sm:$0xff]
          %v573 = vld [vmem:[%s303 + $0x40] sm:$0xff]
          %v574 = vld [vmem:[%s303 + $0x48] sm:$0xff]
          %v575 = vld [vmem:[%s303 + $0x50] sm:$0xff]
          %v576 = vld [vmem:[%s303 + $0x58] sm:$0xff]
          %v577 = vld [vmem:[%s303 + $0x60] sm:$0xff]
          %v578 = vld [vmem:[%s303 + $0x68] sm:$0xff]
          %v579 = vld [vmem:[%s303 + $0x70] sm:$0xff]
          %v580 = vld [vmem:[%s303 + $0x78] sm:$0xff]
          %v581 = vld [vmem:[%s316] sm:$0xff]
          %v582 = vld [vmem:[%s316 + $0x8] sm:$0xff]
          %v583 = vld [vmem:[%s316 + $0x10] sm:$0xff]
          %v584 = vld [vmem:[%s316 + $0x18] sm:$0xff]
          %v585 = vld [vmem:[%s316 + $0x20] sm:$0xff]
          %v586 = vld [vmem:[%s316 + $0x28] sm:$0xff]
          %v587 = vld [vmem:[%s316 + $0x30] sm:$0xff]
          %v588 = vld [vmem:[%s316 + $0x38] sm:$0xff]
          %v589 = vld [vmem:[%s316 + $0x40] sm:$0xff]
          %v590 = vld [vmem:[%s316 + $0x48] sm:$0xff]
          %v591 = vld [vmem:[%s316 + $0x50] sm:$0xff]
          %v592 = vld [vmem:[%s316 + $0x58] sm:$0xff]
          %v593 = vld [vmem:[%s316 + $0x60] sm:$0xff]
          %v594 = vld [vmem:[%s316 + $0x68] sm:$0xff]
          %v595 = vld [vmem:[%s316 + $0x70] sm:$0xff]
          %v596 = vld [vmem:[%s316 + $0x78] sm:$0xff]
          %598 = vset.pattern.permute.xlu0 0
          %599 = vperm.xlu0 %598, %v581
          %v600 = vpop.permute.xlu0 %599
          %603 = vset.pattern.permute.xlu0 0
          %604 = vperm.xlu0 %603, %v582
          %v605 = vpop.permute.xlu0 %604
          %608 = vset.pattern.permute.xlu0 0
          %609 = vperm.xlu0 %608, %v583
          %v610 = vpop.permute.xlu0 %609
          %613 = vset.pattern.permute.xlu0 0
          %614 = vperm.xlu0 %613, %v584
          %v615 = vpop.permute.xlu0 %614
          %618 = vset.pattern.permute.xlu0 0
          %619 = vperm.xlu0 %618, %v585
          %v620 = vpop.permute.xlu0 %619
          %623 = vset.pattern.permute.xlu0 0
          %624 = vperm.xlu0 %623, %v586
          %v625 = vpop.permute.xlu0 %624
          %628 = vset.pattern.permute.xlu0 0
          %629 = vperm.xlu0 %628, %v587
          %v630 = vpop.permute.xlu0 %629
          %633 = vset.pattern.permute.xlu0 0
          %634 = vperm.xlu0 %633, %v588
          %v635 = vpop.permute.xlu0 %634
          %638 = vset.pattern.permute.xlu0 0
          %639 = vperm.xlu0 %638, %v589
          %v640 = vpop.permute.xlu0 %639
          %643 = vset.pattern.permute.xlu0 0
          %644 = vperm.xlu0 %643, %v590
          %v645 = vpop.permute.xlu0 %644
          %648 = vset.pattern.permute.xlu0 0
          %649 = vperm.xlu0 %648, %v591
          %v650 = vpop.permute.xlu0 %649
          %653 = vset.pattern.permute.xlu0 0
          %654 = vperm.xlu0 %653, %v592
          %v655 = vpop.permute.xlu0 %654
          %658 = vset.pattern.permute.xlu0 0
          %659 = vperm.xlu0 %658, %v593
          %v660 = vpop.permute.xlu0 %659
          %663 = vset.pattern.permute.xlu0 0
          %664 = vperm.xlu0 %663, %v594
          %v665 = vpop.permute.xlu0 %664
          %668 = vset.pattern.permute.xlu0 0
          %669 = vperm.xlu0 %668, %v595
          %v670 = vpop.permute.xlu0 %669
          %673 = vset.pattern.permute.xlu0 0
          %674 = vperm.xlu0 %673, %v596
          %v675 = vpop.permute.xlu0 %674
          %v677 = vmul.f32 %v565, %v600
          %v678 = vmul.f32 %v566, %v605
          %v679 = vmul.f32 %v567, %v610
          %v680 = vmul.f32 %v568, %v615
          %v681 = vmul.f32 %v569, %v620
          %v682 = vmul.f32 %v570, %v625
          %v683 = vmul.f32 %v571, %v630
          %v684 = vmul.f32 %v572, %v635
          %v685 = vmul.f32 %v573, %v640
          %v686 = vmul.f32 %v574, %v645
          %v687 = vmul.f32 %v575, %v650
          %v688 = vmul.f32 %v576, %v655
          %v689 = vmul.f32 %v577, %v660
          %v690 = vmul.f32 %v578, %v665
          %v691 = vmul.f32 %v579, %v670
          %v692 = vmul.f32 %v580, %v675
          %v693 = vld [vmem:[%s310] sm:$0xff]
          %v694 = vld [vmem:[%s310 + $0x8] sm:$0xff]
          %v695 = vld [vmem:[%s310 + $0x10] sm:$0xff]
          %v696 = vld [vmem:[%s310 + $0x18] sm:$0xff]
          %v697 = vld [vmem:[%s310 + $0x20] sm:$0xff]
          %v698 = vld [vmem:[%s310 + $0x28] sm:$0xff]
          %v699 = vld [vmem:[%s310 + $0x30] sm:$0xff]
          %v700 = vld [vmem:[%s310 + $0x38] sm:$0xff]
          %v701 = vld [vmem:[%s310 + $0x40] sm:$0xff]
          %v702 = vld [vmem:[%s310 + $0x48] sm:$0xff]
          %v703 = vld [vmem:[%s310 + $0x50] sm:$0xff]
          %v704 = vld [vmem:[%s310 + $0x58] sm:$0xff]
          %v705 = vld [vmem:[%s310 + $0x60] sm:$0xff]
          %v706 = vld [vmem:[%s310 + $0x68] sm:$0xff]
          %v707 = vld [vmem:[%s310 + $0x70] sm:$0xff]
          %v708 = vld [vmem:[%s310 + $0x78] sm:$0xff]
          %v709 = vadd.f32 %v677, %v693
          %v710 = vadd.f32 %v678, %v694
          %v711 = vadd.f32 %v679, %v695
          %v712 = vadd.f32 %v680, %v696
          %v713 = vadd.f32 %v681, %v697
          %v714 = vadd.f32 %v682, %v698
          %v715 = vadd.f32 %v683, %v699
          %v716 = vadd.f32 %v684, %v700
          %v717 = vadd.f32 %v685, %v701
          %v718 = vadd.f32 %v686, %v702
          %v719 = vadd.f32 %v687, %v703
          %v720 = vadd.f32 %v688, %v704
          %v721 = vadd.f32 %v689, %v705
          %v722 = vadd.f32 %v690, %v706
          %v723 = vadd.f32 %v691, %v707
          %v724 = vadd.f32 %v692, %v708
          %v725 = vmax.f32 %v709, 0.0
          %v726 = vmax.f32 %v710, 0.0
          %v727 = vmax.f32 %v711, 0.0
          %v728 = vmax.f32 %v712, 0.0
          %v729 = vmax.f32 %v713, 0.0
          %v730 = vmax.f32 %v714, 0.0
          %v731 = vmax.f32 %v715, 0.0
          %v732 = vmax.f32 %v716, 0.0
          %v733 = vmax.f32 %v717, 0.0
          %v734 = vmax.f32 %v718, 0.0
          %v735 = vmax.f32 %v719, 0.0
          %v736 = vmax.f32 %v720, 0.0
          %v737 = vmax.f32 %v721, 0.0
          %v738 = vmax.f32 %v722, 0.0
          %v739 = vmax.f32 %v723, 0.0
          %v740 = vmax.f32 %v724, 0.0
          %741 = vst [vmem:[%s303] sm:$0xff] %v725
          %742 = vst [vmem:[%s303 + $0x8] sm:$0xff] %v726
          %743 = vst [vmem:[%s303 + $0x10] sm:$0xff] %v727
          %744 = vst [vmem:[%s303 + $0x18] sm:$0xff] %v728
          %745 = vst [vmem:[%s303 + $0x20] sm:$0xff] %v729
          %746 = vst [vmem:[%s303 + $0x28] sm:$0xff] %v730
          %747 = vst [vmem:[%s303 + $0x30] sm:$0xff] %v731
          %748 = vst [vmem:[%s303 + $0x38] sm:$0xff] %v732
          %749 = vst [vmem:[%s303 + $0x40] sm:$0xff] %v733
          %750 = vst [vmem:[%s303 + $0x48] sm:$0xff] %v734
          %751 = vst [vmem:[%s303 + $0x50] sm:$0xff] %v735
          %752 = vst [vmem:[%s303 + $0x58] sm:$0xff] %v736
          %753 = vst [vmem:[%s303 + $0x60] sm:$0xff] %v737
          %754 = vst [vmem:[%s303 + $0x68] sm:$0xff] %v738
          %755 = vst [vmem:[%s303 + $0x70] sm:$0xff] %v739
          %756 = vst [vmem:[%s303 + $0x78] sm:$0xff] %v740
        $region52: #{tpu_custom_call.1} parent=35 // pred_fallthru
          _
        %s757 = sand.u32 %s150, 1
        %s758 = scalar_lea.sflag [#allocation4], %s757
        %s759 = sand.u32 %s150, 1
        %s760 = smul.addr %s759, 128
        %s761 = scalar_lea.vmem [#allocation7], %s760
        // Predicated region
        $region53: #{tpu_custom_call.1} parent=35 // pred_check
          %p762 = pneg %p160
        $region54: #{tpu_custom_call.1} parent=35 // pred_check_branch
          %764 = sbr.rel (%p762) target = $region56
        $region55: #{tpu_custom_call.1} parent=35 // pred_region
          %s765 = smul.u32 16, %s28
          %s767 = ssub.s32 2048, 2048
          %768 = vsyncadd %s758, %s767
          %s769 = smul.addr %s765, 128
          %s770 = scalar_lea.hbm %s4, %s769
          %s771 = sshll.u32 %s761, 4
          %s772 = int_to_ptr.vmem [resolvable:$true] %s771
          %777 = dma.vmem_to_hbm [thread:$0]  %s772, 2048, %s770, %s758, 128, 128, 8
        $region56: #{tpu_custom_call.1} parent=35 // pred_fallthru
          _
      $region36: #{tpu_custom_call.1} parent=5 // pred_fallthru
        _
      %p778 = scmp.le.s32.totalorder 2, %s19
      // Predicated region
      $region57: #{tpu_custom_call.1} parent=5 // pred_check
        %p779 = pneg %p778
      $region58: #{tpu_custom_call.1} parent=5 // pred_check_branch
        %781 = sbr.rel (%p779) target = $region60
      $region59: #{tpu_custom_call.1} parent=5 // pred_region
        %s782 = ssub.s32 %s19, 2
        // Predicated region
        $region61: #{tpu_custom_call.1} parent=59 // pred_check
          %p783 = pneg %p166
        $region62: #{tpu_custom_call.1} parent=59 // pred_check_branch
          %785 = sbr.rel (%p783) target = $region64
        $region63: #{tpu_custom_call.1} parent=59 // pred_region
          %s786 = sand.u32 %s151, 1
          %s787 = scalar_lea.sflag [#allocation4], %s786
          %s788 = sand.u32 %s151, 1
          %s789 = smul.addr %s788, 128
          %s790 = scalar_lea.vmem [#allocation7], %s789
          %791 = dma.done %s787, 2048
        $region64: #{tpu_custom_call.1} parent=59 // pred_fallthru
          _
      $region60: #{tpu_custom_call.1} parent=5 // pred_fallthru
        _
    $region6: #{tpu_custom_call.1} parent=1 // loop_footer
      %s23 = sadd.s32 1, %s19
    $region7: #{tpu_custom_call.1} parent=1 // loop_footer_branch
      %18 = sbr.rel target = $region3
    $region8: #{tpu_custom_call.1} parent=1 // loop_exit
      _
    %792 = vsyncpa [#allocation3], 1
    %s793 = scalar_lea.sflag [#allocation3], 1
    %794 = vsyncpa %s793, 1
    %795 = vsyncpa [#allocation6], 1
    %s796 = scalar_lea.sflag [#allocation6], 1
    %797 = vsyncpa %s796, 1
    %798 = vsyncpa [#allocation4], 1
    %s799 = scalar_lea.sflag [#allocation4], 1
    %800 = vsyncpa %s799, 1

</llo_original>
